<compile_context>
chip_gen: v7x
topology: tpu7x:2x2x1
jax: 0.10.0
libtpu: 0.0.40
codegen_flags: <defaults>
</compile_context>

<pallas_src>
import jax
import jax.numpy as jnp
from jax.experimental import pallas as pl
from jax.experimental.pallas import tpu as pltpu


# ----------------------------------------------------------------------------
# Fused kernel: embedding (one-hot gather) -> LSTM recurrence -> final linear
# ----------------------------------------------------------------------------
def lstm_fused_kernel(ids_ref, emb_ref, wih_ref, whh_ref, bias_ref,
                      wout_ref, bout_ref, y_ref):
    """ids_ref:(S*B,1) int32 time-major   emb_ref:(C,E)   wih_ref:(E,4H)
       whh_ref:(H,4H)   bias_ref:(1,4H)   wout_ref:(H,C)  bout_ref:(1,C)
       y_ref:(B,C)."""
    n_class = emb_ref.shape[0]
    H = whh_ref.shape[0]
    B = y_ref.shape[0]
    SB = ids_ref.shape[0]
    S = SB // B

    # ---- hoist every ref read + bf16 cast of MXU operands (done ONCE) -------
    emb_bf = emb_ref[...].astype(jnp.bfloat16)          # (C, E)
    wih_bf = wih_ref[...].astype(jnp.bfloat16)          # (E, 4H)
    whh_bf = whh_ref[...].astype(jnp.bfloat16)          # (H, 4H)  <- was re-read per step
    wout_bf = wout_ref[...].astype(jnp.bfloat16)        # (H, C)
    bias = bias_ref[...]                                 # (1, 4H) f32
    bout = bout_ref[...]                                 # (1, C)  f32

    # ---- input side, fully hoisted out of the recurrence --------------------
    # Projected-embedding gate table (bias folded in once): (n_class, 4H), f32.
    gate_table = (jnp.dot(emb_bf, wih_bf,
                          preferred_element_type=jnp.float32) + bias)
    # Whole-sequence embedding gather as an exact one-hot matmul (MXU-friendly,
    # no dynamic indexing): (S*B, C) @ (C, 4H) -> (S*B, 4H) in f32.
    onehot = (ids_ref[...] ==
              jax.lax.broadcasted_iota(jnp.int32, (SB, n_class), 1)
              ).astype(jnp.bfloat16)
    gates_x = jnp.dot(onehot, gate_table.astype(jnp.bfloat16),
                      preferred_element_type=jnp.float32)

    # ---- recurrence: only h @ W_hh remains on the serial critical path ------
    h = jnp.zeros((B, H), jnp.float32)
    c = jnp.zeros((B, H), jnp.float32)
    # Small static S -> fully unrolled, static slicing.  (Switch to
    # lax.fori_loop(unroll=k) for larger S to avoid vreg spill.)
    for t in range(S):
        gates = gates_x[t * B:(t + 1) * B, :] + jnp.dot(
            h.astype(jnp.bfloat16), whh_bf,
            preferred_element_type=jnp.float32)                       # (B,4H)
        sg = jax.nn.sigmoid(gates)   # one EUP pass covers i, f, o (f32)
        tg = jnp.tanh(gates)         # one EUP pass covers g        (f32)
        i = sg[:, 0 * H:1 * H]       # PyTorch gate order: i, f, g, o
        f = sg[:, 1 * H:2 * H]
        g = tg[:, 2 * H:3 * H]
        o = sg[:, 3 * H:4 * H]
        c = f * c + i * g
        h = o * jnp.tanh(c)

    # ---- final linear on the last hidden state: h_S @ W^T + b ---------------
    y_ref[...] = (jnp.dot(h.astype(jnp.bfloat16), wout_bf,
                          preferred_element_type=jnp.float32) + bout)


# ----------------------------------------------------------------------------
# Wrapper: parameter re-layout (transposes of tiny weights) + single pallas_call
# ----------------------------------------------------------------------------
def lstm_forward(X, emb, w_ih, w_hh, b_ih, b_hh, W, b):
    B, S = X.shape
    H = w_hh.shape[1]
    n_class = W.shape[0]

    # Time-major flat token ids, (S*B, 1) int32 (negligible XLA work).
    ids = jnp.transpose(X).reshape(S * B, 1).astype(jnp.int32)

    wih_t = jnp.transpose(w_ih)                     # (E, 4H)
    whh_t = jnp.transpose(w_hh)                     # (H, 4H)
    bias = (b_ih + b_hh).reshape(1, 4 * H)          # (1, 4H)
    wout_t = jnp.transpose(W)                       # (H, n_class)
    bout = b.reshape(1, n_class)                    # (1, n_class)

    vmem = pl.BlockSpec(memory_space=pltpu.MemorySpace.VMEM)

    # Single grid-less call, everything resident in VMEM (~50 KB total):
    # no grid / DMA / pipelining needed (or helpful) at this problem size.
    return pl.pallas_call(
        lstm_fused_kernel,
        out_shape=jax.ShapeDtypeStruct((B, n_class), jnp.float32),
        in_specs=[vmem] * 7,
        out_specs=vmem,
    )(ids, emb.astype(jnp.float32), wih_t, whh_t, bias, wout_t, bout)


# ----------------------------------------------------------------------------
# Pure-JAX f32 reference (same math as the PyTorch module) for correctness
# ----------------------------------------------------------------------------
def reference(X, emb, w_ih, w_hh, b_ih, b_hh, W, b):
    xe = jnp.transpose(emb[X], (1, 0, 2))           # (S, B, E)
    S, B, _ = xe.shape
    H = w_hh.shape[1]
    h = jnp.zeros((B, H), jnp.float32)
    c = jnp.zeros((B, H), jnp.float32)
    for t in range(S):
        gates = xe[t] @ w_ih.T + h @ w_hh.T + b_ih + b_hh
        i = jax.nn.sigmoid(gates[:, :H])
        f = jax.nn.sigmoid(gates[:, H:2 * H])
        g = jnp.tanh(gates[:, 2 * H:3 * H])
        o = jax.nn.sigmoid(gates[:, 3 * H:])
        c = f * c + i * g
        h = o * jnp.tanh(c)
    return h @ W.T + b


if __name__ == "__main__":
    # Small deterministic config: n_class=16, emb_size=32, n_hidden=32, B=2, S=8
    n_class, emb_size, n_hidden = 16, 32, 32
    B, S = 2, 8

    key = jax.random.PRNGKey(0)
    k = jax.random.split(key, 8)
    X = jax.random.randint(k[0], (B, S), 0, n_class, dtype=jnp.int32)

    emb = jax.random.normal(k[1], (n_class, emb_size), jnp.float32)
    lim = 1.0 / (n_hidden ** 0.5)
    w_ih = jax.random.uniform(k[2], (4 * n_hidden, emb_size), jnp.float32, -lim, lim)
    w_hh = jax.random.uniform(k[3], (4 * n_hidden, n_hidden), jnp.float32, -lim, lim)
    b_ih = jax.random.uniform(k[4], (4 * n_hidden,), jnp.float32, -lim, lim)
    b_hh = jax.random.uniform(k[5], (4 * n_hidden,), jnp.float32, -lim, lim)
    lim_w = 1.0 / (n_hidden ** 0.5)
    W = jax.random.uniform(k[6], (n_class, n_hidden), jnp.float32, -lim_w, lim_w)
    b = jnp.ones((n_class,), jnp.float32)   # nn.Parameter(torch.ones([n_class]))

    out = lstm_forward(X, emb, w_ih, w_hh, b_ih, b_hh, W, b)
    out = jax.block_until_ready(out)

    ref = reference(X, emb, w_ih, w_hh, b_ih, b_hh, W, b)
    assert out.shape == (B, n_class)
    # Tolerance relaxed vs the pure-f32 version: MXU operands are bf16
    # (f32 accumulation), so gates carry ~1e-3-level rounding that compounds
    # over the 8 recurrent steps.
    assert jnp.allclose(out, ref, rtol=5e-2, atol=5e-2), "mismatch vs JAX reference"
    print("KERNEL_OK")
</pallas_src>

<mosaic_0001>
module attributes {stable_mosaic.version = 11 : i64} {
  func.func @lstm_fused_kernel(%arg0: memref<16x1xi32, #tpu.memory_space<vmem>>, %arg1: memref<16x32xf32, #tpu.memory_space<vmem>>, %arg2: memref<32x128xf32, #tpu.memory_space<vmem>>, %arg3: memref<32x128xf32, #tpu.memory_space<vmem>>, %arg4: memref<1x128xf32, #tpu.memory_space<vmem>>, %arg5: memref<32x16xf32, #tpu.memory_space<vmem>>, %arg6: memref<1x16xf32, #tpu.memory_space<vmem>>, %arg7: memref<2x16xf32, #tpu.memory_space<vmem>>) attributes {dimension_semantics = [], scalar_prefetch = 0 : i64, scratch_operands = 0 : i64, tpu.core_type = #tpu.core_type<tc>} {
    %c0 = arith.constant 0 : index
    %c0_0 = arith.constant 0 : index
    %0 = vector.load %arg1[%c0, %c0_0] : memref<16x32xf32, #tpu.memory_space<vmem>>, vector<16x32xf32>
    %1 = arith.truncf %0 : vector<16x32xf32> to vector<16x32xbf16>
    %c0_1 = arith.constant 0 : index
    %c0_2 = arith.constant 0 : index
    %2 = vector.load %arg2[%c0_1, %c0_2] : memref<32x128xf32, #tpu.memory_space<vmem>>, vector<32x128xf32>
    %3 = arith.truncf %2 : vector<32x128xf32> to vector<32x128xbf16>
    %c0_3 = arith.constant 0 : index
    %c0_4 = arith.constant 0 : index
    %4 = vector.load %arg3[%c0_3, %c0_4] : memref<32x128xf32, #tpu.memory_space<vmem>>, vector<32x128xf32>
    %5 = arith.truncf %4 : vector<32x128xf32> to vector<32x128xbf16>
    %c0_5 = arith.constant 0 : index
    %c0_6 = arith.constant 0 : index
    %6 = vector.load %arg5[%c0_5, %c0_6] : memref<32x16xf32, #tpu.memory_space<vmem>>, vector<32x16xf32>
    %7 = arith.truncf %6 : vector<32x16xf32> to vector<32x16xbf16>
    %c0_7 = arith.constant 0 : index
    %c0_8 = arith.constant 0 : index
    %8 = vector.load %arg4[%c0_7, %c0_8] : memref<1x128xf32, #tpu.memory_space<vmem>>, vector<1x128xf32>
    %c0_9 = arith.constant 0 : index
    %c0_10 = arith.constant 0 : index
    %9 = vector.load %arg6[%c0_9, %c0_10] : memref<1x16xf32, #tpu.memory_space<vmem>>, vector<1x16xf32>
    %cst = arith.constant dense<0.000000e+00> : vector<16x128xf32>
    %10 = tpu.matmul %1, %3, %cst {dimension_numbers = #tpu.dot_dimension_numbers<[1], [0], [0], [1], [0, 0, 1, 1], [], []>} : vector<16x32xbf16>, vector<32x128xbf16>, vector<16x128xf32> -> vector<16x128xf32>
    %11 = vector.broadcast %8 : vector<1x128xf32> to vector<16x128xf32>
    %12 = arith.addf %10, %11 : vector<16x128xf32>
    %c0_11 = arith.constant 0 : index
    %c0_12 = arith.constant 0 : index
    %13 = vector.load %arg0[%c0_11, %c0_12] : memref<16x1xi32, #tpu.memory_space<vmem>>, vector<16x1xi32>
    %14 = tpu.iota {dimensions = array<i32: 1>} : vector<16x16xi32>
    %15 = vector.broadcast %13 : vector<16x1xi32> to vector<16x16xi32>
    %16 = arith.cmpi eq, %15, %14 : vector<16x16xi32>
    %17 = arith.extui %16 : vector<16x16xi1> to vector<16x16xi32>
    %18 = arith.sitofp %17 : vector<16x16xi32> to vector<16x16xf32>
    %19 = arith.truncf %18 : vector<16x16xf32> to vector<16x16xbf16>
    %20 = arith.truncf %12 : vector<16x128xf32> to vector<16x128xbf16>
    %cst_13 = arith.constant dense<0.000000e+00> : vector<16x128xf32>
    %21 = tpu.matmul %19, %20, %cst_13 {dimension_numbers = #tpu.dot_dimension_numbers<[1], [0], [0], [1], [0, 0, 1, 1], [], []>} : vector<16x16xbf16>, vector<16x128xbf16>, vector<16x128xf32> -> vector<16x128xf32>
    %cst_14 = arith.constant 0.000000e+00 : f32
    %22 = vector.broadcast %cst_14 : f32 to vector<2x32xf32>
    %cst_15 = arith.constant 0.000000e+00 : f32
    %23 = vector.broadcast %cst_15 : f32 to vector<2x32xf32>
    %24 = vector.extract_strided_slice %21 {offsets = [0, 0], sizes = [2, 128], strides = [1, 1]} : vector<16x128xf32> to vector<2x128xf32>
    %25 = arith.truncf %22 : vector<2x32xf32> to vector<2x32xbf16>
    %cst_16 = arith.constant dense<0.000000e+00> : vector<2x128xf32>
    %26 = tpu.matmul %25, %5, %cst_16 {dimension_numbers = #tpu.dot_dimension_numbers<[1], [0], [0], [1], [0, 0, 1, 1], [], []>} : vector<2x32xbf16>, vector<32x128xbf16>, vector<2x128xf32> -> vector<2x128xf32>
    %27 = arith.addf %24, %26 : vector<2x128xf32>
    %28 = arith.negf %27 : vector<2x128xf32>
    %29 = math.exp %28 : vector<2x128xf32>
    %cst_17 = arith.constant 1.000000e+00 : f32
    %30 = vector.broadcast %cst_17 : f32 to vector<2x128xf32>
    %31 = arith.addf %30, %29 : vector<2x128xf32>
    %32 = arith.divf %30, %31 : vector<2x128xf32>
    %33 = math.tanh %27 : vector<2x128xf32>
    %34 = vector.extract_strided_slice %32 {offsets = [0, 0], sizes = [2, 32], strides = [1, 1]} : vector<2x128xf32> to vector<2x32xf32>
    %35 = vector.extract_strided_slice %32 {offsets = [0, 32], sizes = [2, 32], strides = [1, 1]} : vector<2x128xf32> to vector<2x32xf32>
    %36 = vector.extract_strided_slice %33 {offsets = [0, 64], sizes = [2, 32], strides = [1, 1]} : vector<2x128xf32> to vector<2x32xf32>
    %37 = vector.extract_strided_slice %32 {offsets = [0, 96], sizes = [2, 32], strides = [1, 1]} : vector<2x128xf32> to vector<2x32xf32>
    %38 = arith.mulf %35, %23 : vector<2x32xf32>
    %39 = arith.mulf %34, %36 : vector<2x32xf32>
    %40 = arith.addf %38, %39 : vector<2x32xf32>
    %41 = math.tanh %40 : vector<2x32xf32>
    %42 = arith.mulf %37, %41 : vector<2x32xf32>
    %43 = vector.extract_strided_slice %21 {offsets = [2, 0], sizes = [2, 128], strides = [1, 1]} : vector<16x128xf32> to vector<2x128xf32>
    %44 = arith.truncf %42 : vector<2x32xf32> to vector<2x32xbf16>
    %cst_18 = arith.constant dense<0.000000e+00> : vector<2x128xf32>
    %45 = tpu.matmul %44, %5, %cst_18 {dimension_numbers = #tpu.dot_dimension_numbers<[1], [0], [0], [1], [0, 0, 1, 1], [], []>} : vector<2x32xbf16>, vector<32x128xbf16>, vector<2x128xf32> -> vector<2x128xf32>
    %46 = arith.addf %43, %45 : vector<2x128xf32>
    %47 = arith.negf %46 : vector<2x128xf32>
    %48 = math.exp %47 : vector<2x128xf32>
    %cst_19 = arith.constant 1.000000e+00 : f32
    %49 = vector.broadcast %cst_19 : f32 to vector<2x128xf32>
    %50 = arith.addf %49, %48 : vector<2x128xf32>
    %51 = arith.divf %49, %50 : vector<2x128xf32>
    %52 = math.tanh %46 : vector<2x128xf32>
    %53 = vector.extract_strided_slice %51 {offsets = [0, 0], sizes = [2, 32], strides = [1, 1]} : vector<2x128xf32> to vector<2x32xf32>
    %54 = vector.extract_strided_slice %51 {offsets = [0, 32], sizes = [2, 32], strides = [1, 1]} : vector<2x128xf32> to vector<2x32xf32>
    %55 = vector.extract_strided_slice %52 {offsets = [0, 64], sizes = [2, 32], strides = [1, 1]} : vector<2x128xf32> to vector<2x32xf32>
    %56 = vector.extract_strided_slice %51 {offsets = [0, 96], sizes = [2, 32], strides = [1, 1]} : vector<2x128xf32> to vector<2x32xf32>
    %57 = arith.mulf %54, %40 : vector<2x32xf32>
    %58 = arith.mulf %53, %55 : vector<2x32xf32>
    %59 = arith.addf %57, %58 : vector<2x32xf32>
    %60 = math.tanh %59 : vector<2x32xf32>
    %61 = arith.mulf %56, %60 : vector<2x32xf32>
    %62 = vector.extract_strided_slice %21 {offsets = [4, 0], sizes = [2, 128], strides = [1, 1]} : vector<16x128xf32> to vector<2x128xf32>
    %63 = arith.truncf %61 : vector<2x32xf32> to vector<2x32xbf16>
    %cst_20 = arith.constant dense<0.000000e+00> : vector<2x128xf32>
    %64 = tpu.matmul %63, %5, %cst_20 {dimension_numbers = #tpu.dot_dimension_numbers<[1], [0], [0], [1], [0, 0, 1, 1], [], []>} : vector<2x32xbf16>, vector<32x128xbf16>, vector<2x128xf32> -> vector<2x128xf32>
    %65 = arith.addf %62, %64 : vector<2x128xf32>
    %66 = arith.negf %65 : vector<2x128xf32>
    %67 = math.exp %66 : vector<2x128xf32>
    %cst_21 = arith.constant 1.000000e+00 : f32
    %68 = vector.broadcast %cst_21 : f32 to vector<2x128xf32>
    %69 = arith.addf %68, %67 : vector<2x128xf32>
    %70 = arith.divf %68, %69 : vector<2x128xf32>
    %71 = math.tanh %65 : vector<2x128xf32>
    %72 = vector.extract_strided_slice %70 {offsets = [0, 0], sizes = [2, 32], strides = [1, 1]} : vector<2x128xf32> to vector<2x32xf32>
    %73 = vector.extract_strided_slice %70 {offsets = [0, 32], sizes = [2, 32], strides = [1, 1]} : vector<2x128xf32> to vector<2x32xf32>
    %74 = vector.extract_strided_slice %71 {offsets = [0, 64], sizes = [2, 32], strides = [1, 1]} : vector<2x128xf32> to vector<2x32xf32>
    %75 = vector.extract_strided_slice %70 {offsets = [0, 96], sizes = [2, 32], strides = [1, 1]} : vector<2x128xf32> to vector<2x32xf32>
    %76 = arith.mulf %73, %59 : vector<2x32xf32>
    %77 = arith.mulf %72, %74 : vector<2x32xf32>
    %78 = arith.addf %76, %77 : vector<2x32xf32>
    %79 = math.tanh %78 : vector<2x32xf32>
    %80 = arith.mulf %75, %79 : vector<2x32xf32>
    %81 = vector.extract_strided_slice %21 {offsets = [6, 0], sizes = [2, 128], strides = [1, 1]} : vector<16x128xf32> to vector<2x128xf32>
    %82 = arith.truncf %80 : vector<2x32xf32> to vector<2x32xbf16>
    %cst_22 = arith.constant dense<0.000000e+00> : vector<2x128xf32>
    %83 = tpu.matmul %82, %5, %cst_22 {dimension_numbers = #tpu.dot_dimension_numbers<[1], [0], [0], [1], [0, 0, 1, 1], [], []>} : vector<2x32xbf16>, vector<32x128xbf16>, vector<2x128xf32> -> vector<2x128xf32>
    %84 = arith.addf %81, %83 : vector<2x128xf32>
    %85 = arith.negf %84 : vector<2x128xf32>
    %86 = math.exp %85 : vector<2x128xf32>
    %cst_23 = arith.constant 1.000000e+00 : f32
    %87 = vector.broadcast %cst_23 : f32 to vector<2x128xf32>
    %88 = arith.addf %87, %86 : vector<2x128xf32>
    %89 = arith.divf %87, %88 : vector<2x128xf32>
    %90 = math.tanh %84 : vector<2x128xf32>
    %91 = vector.extract_strided_slice %89 {offsets = [0, 0], sizes = [2, 32], strides = [1, 1]} : vector<2x128xf32> to vector<2x32xf32>
    %92 = vector.extract_strided_slice %89 {offsets = [0, 32], sizes = [2, 32], strides = [1, 1]} : vector<2x128xf32> to vector<2x32xf32>
    %93 = vector.extract_strided_slice %90 {offsets = [0, 64], sizes = [2, 32], strides = [1, 1]} : vector<2x128xf32> to vector<2x32xf32>
    %94 = vector.extract_strided_slice %89 {offsets = [0, 96], sizes = [2, 32], strides = [1, 1]} : vector<2x128xf32> to vector<2x32xf32>
    %95 = arith.mulf %92, %78 : vector<2x32xf32>
    %96 = arith.mulf %91, %93 : vector<2x32xf32>
    %97 = arith.addf %95, %96 : vector<2x32xf32>
    %98 = math.tanh %97 : vector<2x32xf32>
    %99 = arith.mulf %94, %98 : vector<2x32xf32>
    %100 = vector.extract_strided_slice %21 {offsets = [8, 0], sizes = [2, 128], strides = [1, 1]} : vector<16x128xf32> to vector<2x128xf32>
    %101 = arith.truncf %99 : vector<2x32xf32> to vector<2x32xbf16>
    %cst_24 = arith.constant dense<0.000000e+00> : vector<2x128xf32>
    %102 = tpu.matmul %101, %5, %cst_24 {dimension_numbers = #tpu.dot_dimension_numbers<[1], [0], [0], [1], [0, 0, 1, 1], [], []>} : vector<2x32xbf16>, vector<32x128xbf16>, vector<2x128xf32> -> vector<2x128xf32>
    %103 = arith.addf %100, %102 : vector<2x128xf32>
    %104 = arith.negf %103 : vector<2x128xf32>
    %105 = math.exp %104 : vector<2x128xf32>
    %cst_25 = arith.constant 1.000000e+00 : f32
    %106 = vector.broadcast %cst_25 : f32 to vector<2x128xf32>
    %107 = arith.addf %106, %105 : vector<2x128xf32>
    %108 = arith.divf %106, %107 : vector<2x128xf32>
    %109 = math.tanh %103 : vector<2x128xf32>
    %110 = vector.extract_strided_slice %108 {offsets = [0, 0], sizes = [2, 32], strides = [1, 1]} : vector<2x128xf32> to vector<2x32xf32>
    %111 = vector.extract_strided_slice %108 {offsets = [0, 32], sizes = [2, 32], strides = [1, 1]} : vector<2x128xf32> to vector<2x32xf32>
    %112 = vector.extract_strided_slice %109 {offsets = [0, 64], sizes = [2, 32], strides = [1, 1]} : vector<2x128xf32> to vector<2x32xf32>
    %113 = vector.extract_strided_slice %108 {offsets = [0, 96], sizes = [2, 32], strides = [1, 1]} : vector<2x128xf32> to vector<2x32xf32>
    %114 = arith.mulf %111, %97 : vector<2x32xf32>
    %115 = arith.mulf %110, %112 : vector<2x32xf32>
    %116 = arith.addf %114, %115 : vector<2x32xf32>
    %117 = math.tanh %116 : vector<2x32xf32>
    %118 = arith.mulf %113, %117 : vector<2x32xf32>
    %119 = vector.extract_strided_slice %21 {offsets = [10, 0], sizes = [2, 128], strides = [1, 1]} : vector<16x128xf32> to vector<2x128xf32>
    %120 = arith.truncf %118 : vector<2x32xf32> to vector<2x32xbf16>
    %cst_26 = arith.constant dense<0.000000e+00> : vector<2x128xf32>
    %121 = tpu.matmul %120, %5, %cst_26 {dimension_numbers = #tpu.dot_dimension_numbers<[1], [0], [0], [1], [0, 0, 1, 1], [], []>} : vector<2x32xbf16>, vector<32x128xbf16>, vector<2x128xf32> -> vector<2x128xf32>
    %122 = arith.addf %119, %121 : vector<2x128xf32>
    %123 = arith.negf %122 : vector<2x128xf32>
    %124 = math.exp %123 : vector<2x128xf32>
    %cst_27 = arith.constant 1.000000e+00 : f32
    %125 = vector.broadcast %cst_27 : f32 to vector<2x128xf32>
    %126 = arith.addf %125, %124 : vector<2x128xf32>
    %127 = arith.divf %125, %126 : vector<2x128xf32>
    %128 = math.tanh %122 : vector<2x128xf32>
    %129 = vector.extract_strided_slice %127 {offsets = [0, 0], sizes = [2, 32], strides = [1, 1]} : vector<2x128xf32> to vector<2x32xf32>
    %130 = vector.extract_strided_slice %127 {offsets = [0, 32], sizes = [2, 32], strides = [1, 1]} : vector<2x128xf32> to vector<2x32xf32>
    %131 = vector.extract_strided_slice %128 {offsets = [0, 64], sizes = [2, 32], strides = [1, 1]} : vector<2x128xf32> to vector<2x32xf32>
    %132 = vector.extract_strided_slice %127 {offsets = [0, 96], sizes = [2, 32], strides = [1, 1]} : vector<2x128xf32> to vector<2x32xf32>
    %133 = arith.mulf %130, %116 : vector<2x32xf32>
    %134 = arith.mulf %129, %131 : vector<2x32xf32>
    %135 = arith.addf %133, %134 : vector<2x32xf32>
    %136 = math.tanh %135 : vector<2x32xf32>
    %137 = arith.mulf %132, %136 : vector<2x32xf32>
    %138 = vector.extract_strided_slice %21 {offsets = [12, 0], sizes = [2, 128], strides = [1, 1]} : vector<16x128xf32> to vector<2x128xf32>
    %139 = arith.truncf %137 : vector<2x32xf32> to vector<2x32xbf16>
    %cst_28 = arith.constant dense<0.000000e+00> : vector<2x128xf32>
    %140 = tpu.matmul %139, %5, %cst_28 {dimension_numbers = #tpu.dot_dimension_numbers<[1], [0], [0], [1], [0, 0, 1, 1], [], []>} : vector<2x32xbf16>, vector<32x128xbf16>, vector<2x128xf32> -> vector<2x128xf32>
    %141 = arith.addf %138, %140 : vector<2x128xf32>
    %142 = arith.negf %141 : vector<2x128xf32>
    %143 = math.exp %142 : vector<2x128xf32>
    %cst_29 = arith.constant 1.000000e+00 : f32
    %144 = vector.broadcast %cst_29 : f32 to vector<2x128xf32>
    %145 = arith.addf %144, %143 : vector<2x128xf32>
    %146 = arith.divf %144, %145 : vector<2x128xf32>
    %147 = math.tanh %141 : vector<2x128xf32>
    %148 = vector.extract_strided_slice %146 {offsets = [0, 0], sizes = [2, 32], strides = [1, 1]} : vector<2x128xf32> to vector<2x32xf32>
    %149 = vector.extract_strided_slice %146 {offsets = [0, 32], sizes = [2, 32], strides = [1, 1]} : vector<2x128xf32> to vector<2x32xf32>
    %150 = vector.extract_strided_slice %147 {offsets = [0, 64], sizes = [2, 32], strides = [1, 1]} : vector<2x128xf32> to vector<2x32xf32>
    %151 = vector.extract_strided_slice %146 {offsets = [0, 96], sizes = [2, 32], strides = [1, 1]} : vector<2x128xf32> to vector<2x32xf32>
    %152 = arith.mulf %149, %135 : vector<2x32xf32>
    %153 = arith.mulf %148, %150 : vector<2x32xf32>
    %154 = arith.addf %152, %153 : vector<2x32xf32>
    %155 = math.tanh %154 : vector<2x32xf32>
    %156 = arith.mulf %151, %155 : vector<2x32xf32>
    %157 = vector.extract_strided_slice %21 {offsets = [14, 0], sizes = [2, 128], strides = [1, 1]} : vector<16x128xf32> to vector<2x128xf32>
    %158 = arith.truncf %156 : vector<2x32xf32> to vector<2x32xbf16>
    %cst_30 = arith.constant dense<0.000000e+00> : vector<2x128xf32>
    %159 = tpu.matmul %158, %5, %cst_30 {dimension_numbers = #tpu.dot_dimension_numbers<[1], [0], [0], [1], [0, 0, 1, 1], [], []>} : vector<2x32xbf16>, vector<32x128xbf16>, vector<2x128xf32> -> vector<2x128xf32>
    %160 = arith.addf %157, %159 : vector<2x128xf32>
    %161 = arith.negf %160 : vector<2x128xf32>
    %162 = math.exp %161 : vector<2x128xf32>
    %cst_31 = arith.constant 1.000000e+00 : f32
    %163 = vector.broadcast %cst_31 : f32 to vector<2x128xf32>
    %164 = arith.addf %163, %162 : vector<2x128xf32>
    %165 = arith.divf %163, %164 : vector<2x128xf32>
    %166 = math.tanh %160 : vector<2x128xf32>
    %167 = vector.extract_strided_slice %165 {offsets = [0, 0], sizes = [2, 32], strides = [1, 1]} : vector<2x128xf32> to vector<2x32xf32>
    %168 = vector.extract_strided_slice %165 {offsets = [0, 32], sizes = [2, 32], strides = [1, 1]} : vector<2x128xf32> to vector<2x32xf32>
    %169 = vector.extract_strided_slice %166 {offsets = [0, 64], sizes = [2, 32], strides = [1, 1]} : vector<2x128xf32> to vector<2x32xf32>
    %170 = vector.extract_strided_slice %165 {offsets = [0, 96], sizes = [2, 32], strides = [1, 1]} : vector<2x128xf32> to vector<2x32xf32>
    %171 = arith.mulf %168, %154 : vector<2x32xf32>
    %172 = arith.mulf %167, %169 : vector<2x32xf32>
    %173 = arith.addf %171, %172 : vector<2x32xf32>
    %174 = math.tanh %173 : vector<2x32xf32>
    %175 = arith.mulf %170, %174 : vector<2x32xf32>
    %176 = arith.truncf %175 : vector<2x32xf32> to vector<2x32xbf16>
    %cst_32 = arith.constant dense<0.000000e+00> : vector<2x16xf32>
    %177 = tpu.matmul %176, %7, %cst_32 {dimension_numbers = #tpu.dot_dimension_numbers<[1], [0], [0], [1], [0, 0, 1, 1], [], []>} : vector<2x32xbf16>, vector<32x16xbf16>, vector<2x16xf32> -> vector<2x16xf32>
    %178 = vector.broadcast %9 : vector<1x16xf32> to vector<2x16xf32>
    %179 = arith.addf %177, %178 : vector<2x16xf32>
    %c0_33 = arith.constant 0 : index
    %c0_34 = arith.constant 0 : index
    %180 = vector.load %arg7[%c0_33, %c0_34] : memref<2x16xf32, #tpu.memory_space<vmem>>, vector<2x16xf32>
    tpu.vector_store %arg7[%c0_33, %c0_34], %179 {strides = array<i32>} : memref<2x16xf32, #tpu.memory_space<vmem>>, vector<2x16xf32>,
    return
  }
}

</mosaic_0001>

<llo_original>
// kernel: tpu_custom_call.1
$region0: #{tpu_custom_call.1}
  #allocation0 [shape = 'u32[]', space=smem, size = 0x4, offset = 0x4, fixed_abs, tag = 'smem constant byte address 0x4 - core index']
  #allocation1 [shape = 'u32[144,128]{1,0:T(1,128)}', space=vmem, size = 0x12000, scoped, tag = 'internal scratch']
  %s0 = inlined_call_operand.vmem [shape: s32[16,1], index: 0, kind: input, shape index: {}]
  %s1 = inlined_call_operand.hbm [shape: f32[16,32], index: 1, kind: input, shape index: {}]
  %s2 = inlined_call_operand.vmem [shape: f32[32,128], index: 2, kind: input, shape index: {}]
  %s3 = inlined_call_operand.vmem [shape: f32[32,128], index: 3, kind: input, shape index: {}]
  %s4 = inlined_call_operand.hbm [shape: f32[1,128], index: 4, kind: input, shape index: {}]
  %s5 = inlined_call_operand.vmem [shape: f32[32,16], index: 5, kind: input, shape index: {}]
  %s6 = inlined_call_operand.vmem [shape: f32[1,16], index: 6, kind: input, shape index: {}]
  %s7 = inlined_call_operand.hbm [shape: f32[2,16], index: 7, kind: output, shape index: {}]
  %s8 = sld [smem:[#allocation0]]
  $region46: #{tpu_custom_call.1} parent=0
    _
  %s10 = ssub.s32 1, %s8
  %s11 = scalar_select 0, %s10, %s8
  $region1: #{tpu_custom_call.1} parent=0
    #allocation2 [shape = 'u8[8192]{0}', space=vmem, size = 0x2000, scoped, tag = 'input window, operand 1, single buffered']
    #allocation3 [shape = 's32[1]{0}', space=sflag, size = 0x4, scoped, tag = 'scoped memory for tpu_custom_call.1']
    #allocation4 [shape = 's32[1]{0}', space=sflag, size = 0x4, scoped, tag = 'scoped memory for tpu_custom_call.1']
    #allocation5 [shape = 'u8[512]{0}', space=vmem, size = 0x400, scoped, tag = 'input window, operand 4, single buffered']
    #allocation6 [shape = 's32[1]{0}', space=sflag, size = 0x4, scoped, tag = 'scoped memory for tpu_custom_call.1']
    #allocation7 [shape = 'u8[1024]{0}', space=vmem, size = 0x400, scoped, tag = 'output window, operand 0, single buffered']
    %12 = vsyncpa [#allocation3], 0
    %13 = vsyncpa [#allocation6], 0
    %14 = vsyncpa [#allocation4], 0
    // Predicated region
    $region2: #{tpu_custom_call.1} parent=1 // pred_check
      _
    $region3: #{tpu_custom_call.1} parent=1 // pred_check_branch
      %16 = sbr.rel (0) target = $region5
    $region4: #{tpu_custom_call.1} parent=1 // pred_region
      _
    $region5: #{tpu_custom_call.1} parent=1 // pred_fallthru
      _
    // Predicated region
    $region6: #{tpu_custom_call.1} parent=1 // pred_check
      _
    $region7: #{tpu_custom_call.1} parent=1 // pred_check_branch
      %18 = sbr.rel (0) target = $region9
    $region8: #{tpu_custom_call.1} parent=1 // pred_region
      %s20 = ssub.s32 256, 256
      %21 = vsyncadd [#allocation3], %s20
      %s22 = sshll.u32 [#allocation2], 4
      %s23 = int_to_ptr.vmem [resolvable:$true] %s22
      %28 = dma.hbm_to_vmem [thread:$0]  %s1, 256, %s23, [#allocation3], 128, 128, 8
    $region9: #{tpu_custom_call.1} parent=1 // pred_fallthru
      _
    // Predicated region
    $region10: #{tpu_custom_call.1} parent=1 // pred_check
      _
    $region11: #{tpu_custom_call.1} parent=1 // pred_check_branch
      %30 = sbr.rel (0) target = $region13
    $region12: #{tpu_custom_call.1} parent=1 // pred_region
      _
    $region13: #{tpu_custom_call.1} parent=1 // pred_fallthru
      _
    // Predicated region
    $region14: #{tpu_custom_call.1} parent=1 // pred_check
      _
    $region15: #{tpu_custom_call.1} parent=1 // pred_check_branch
      %32 = sbr.rel (0) target = $region17
    $region16: #{tpu_custom_call.1} parent=1 // pred_region
      _
    $region17: #{tpu_custom_call.1} parent=1 // pred_fallthru
      _
    // Predicated region
    $region18: #{tpu_custom_call.1} parent=1 // pred_check
      _
    $region19: #{tpu_custom_call.1} parent=1 // pred_check_branch
      %34 = sbr.rel (0) target = $region21
    $region20: #{tpu_custom_call.1} parent=1 // pred_region
      %s36 = ssub.s32 16, 16
      %37 = vsyncadd [#allocation6], %s36
      %s39 = sshll.u32 [#allocation5], 4
      %s40 = int_to_ptr.vmem [resolvable:$true] %s39
      %42 = dma.hbm_to_vmem [thread:$0]  %s4, 16, %s40, [#allocation6]
    $region21: #{tpu_custom_call.1} parent=1 // pred_fallthru
      _
    // Predicated region
    $region22: #{tpu_custom_call.1} parent=1 // pred_check
      _
    $region23: #{tpu_custom_call.1} parent=1 // pred_check_branch
      %44 = sbr.rel (0) target = $region25
    $region24: #{tpu_custom_call.1} parent=1 // pred_region
      _
    $region25: #{tpu_custom_call.1} parent=1 // pred_fallthru
      _
    // Predicated region
    $region26: #{tpu_custom_call.1} parent=1 // pred_check
      _
    $region27: #{tpu_custom_call.1} parent=1 // pred_check_branch
      %46 = sbr.rel (0) target = $region29
    $region28: #{tpu_custom_call.1} parent=1 // pred_region
      _
    $region29: #{tpu_custom_call.1} parent=1 // pred_fallthru
      _
    // Predicated region
    $region30: #{tpu_custom_call.1} parent=1 // pred_check
      _
    $region31: #{tpu_custom_call.1} parent=1 // pred_check_branch
      %48 = sbr.rel (0) target = $region33
    $region32: #{tpu_custom_call.1} parent=1 // pred_region
      %49 = dma.done [#allocation3], 256
    $region33: #{tpu_custom_call.1} parent=1 // pred_fallthru
      _
    // Predicated region
    $region34: #{tpu_custom_call.1} parent=1 // pred_check
      _
    $region35: #{tpu_custom_call.1} parent=1 // pred_check_branch
      %51 = sbr.rel (0) target = $region37
    $region36: #{tpu_custom_call.1} parent=1 // pred_region
      %52 = dma.done [#allocation6], 16
    $region37: #{tpu_custom_call.1} parent=1 // pred_fallthru
      _
    %v54 = vld [vmem:[#allocation2] sm:$0xff]
    %v55 = vld [vmem:[#allocation2 + $0x8] sm:$0xff]
    %v56 = vpack.c.bf16 %v55, %v54
    %v57 = vld [vmem:[%s2] sm:$0xff]
    %v58 = vld [vmem:[%s2 + $0x8] sm:$0xff]
    %v59 = vld [vmem:[%s2 + $0x10] sm:$0xff]
    %v60 = vld [vmem:[%s2 + $0x18] sm:$0xff]
    %v61 = vpack.c.bf16 %v58, %v57
    %v62 = vpack.c.bf16 %v60, %v59
    %v63 = vld [vmem:[%s3] sm:$0xff]
    %v64 = vld [vmem:[%s3 + $0x8] sm:$0xff]
    %v65 = vld [vmem:[%s3 + $0x10] sm:$0xff]
    %v66 = vld [vmem:[%s3 + $0x18] sm:$0xff]
    %v67 = vpack.c.bf16 %v64, %v63
    %v68 = vpack.c.bf16 %v66, %v65
    %v69 = vld [vmem:[%s5] sm:$0xff]
    %v70 = vld [vmem:[%s5 + $0x8] sm:$0xff]
    %v71 = vld [vmem:[%s5 + $0x10] sm:$0xff]
    %v72 = vld [vmem:[%s5 + $0x18] sm:$0xff]
    %v73 = vpack.c.bf16 %v70, %v69
    %v74 = vpack.c.bf16 %v72, %v71
    %v75 = vld [vmem:[#allocation5] sm:$0x1]
    %v76 = vld [vmem:[%s6] sm:$0x1]
    %v78 = vlaneseq
    %v79 = vshrl.u32 %v78, 7
    %v80 = vsub.s32 0, %v79
    %v81 = vrot.slane %v75, %v80
    %vm83 = vcmask 261120
    %v85 = vsel %vm83, %v56, 0
    %87 = vmatprep.subr.bf16.mxu0 0
    %88 = vmatpush1.bf16.msra.mxu0 %v61
    %89 = vmatprep.subr.bf16.mxu0 0
    %90 = vmatpush1.bf16.msra.mxu0 %v62
    %91 = vmatprep.subr.bf16.mxu0 0
    %92 = vmatpush1.bf16.msra.mxu0 0
    %93 = vmatprep.subr.bf16.mxu0 0
    %94 = vmatpush1.bf16.msra.mxu0 0
    %95 = vmatprep.subr.bf16.mxu0 0
    %96 = vmatpush1.bf16.msra.mxu0 0
    %97 = vmatprep.subr.bf16.mxu0 0
    %98 = vmatpush1.bf16.msra.mxu0 0
    %99 = vmatprep.subr.bf16.mxu0 0
    %100 = vmatpush1.bf16.msra.mxu0 0
    %101 = vmatprep.subr.bf16.mxu0 0
    %102 = vmatpush1.bf16.msra.mxu0 0
    %103 = vmatprep.subr.bf16.mxu0 0
    %104 = vmatpush1.bf16.msra.mxu0 0
    %105 = vmatprep.subr.bf16.mxu0 0
    %106 = vmatpush1.bf16.msra.mxu0 0
    %107 = vmatprep.subr.bf16.mxu0 0
    %108 = vmatpush1.bf16.msra.mxu0 0
    %109 = vmatprep.subr.bf16.mxu0 0
    %110 = vmatpush1.bf16.msra.mxu0 0
    %111 = vmatprep.subr.bf16.mxu0 0
    %112 = vmatpush1.bf16.msra.mxu0 0
    %113 = vmatprep.subr.bf16.mxu0 0
    %114 = vmatpush1.bf16.msra.mxu0 0
    %115 = vmatprep.subr.bf16.mxu0 0
    %116 = vmatpush1.bf16.msra.mxu0 0
    %117 = vmatprep.subr.bf16.mxu0 0
    %118 = vmatpush1.bf16.msra.mxu0 0
    %119 = vmatprep.mubr.bf16.mxu0 0
    %120 = vmatmul.mubr.bf16.gmra.mrb[0].mxu0 %v85
    %v121 = vpop.f32.mrb[0].mxu0
    %v122 = vadd.f32 %v81, %v121
    %v123 = vpop.f32.mrb[0].mxu0
    %v124 = vpop.f32.mrb[0].mxu0
    %v125 = vadd.f32 %v81, %v124
    %v126 = vpop.f32.mrb[0].mxu0
    %127 = vdwg.mxu0
    %v128 = vld [vmem:[%s0] sm:$0xff]
    %v129 = vld [vmem:[%s0 + $0x8] sm:$0xff]
    %v130 = vlaneseq
    %v131 = vand.u32 %v130, 127
    %132 = vset.pattern.permute.xlu0 0
    %133 = vperm.xlu0 %132, %v128
    %v134 = vpop.permute.xlu0 %133
    %135 = vset.pattern.permute.xlu0 0
    %136 = vperm.xlu0 %135, %v129
    %v137 = vpop.permute.xlu0 %136
    %vm138 = vcmp.eq.s32.totalorder %v134, %v131
    %vm139 = vcmp.eq.s32.totalorder %v137, %v131
    %v140 = vsel %vm138, 1, 0
    %v141 = vsel %vm139, 1, 0
    %v142 = vcvt.s32.f32 %v140
    %v143 = vcvt.s32.f32 %v141
    %v144 = vpack.c.bf16 %v143, %v142
    %v145 = vpack.c.bf16 %v125, %v122
    %vm146 = vcmask 130048
    %v148 = vsel %vm146, %v144, 0
    %150 = vmatprep.subr.bf16.mxu0 0
    %151 = vmatpush1.bf16.msra.mxu0 %v145
    %152 = vmatprep.subr.bf16.mxu0 0
    %153 = vmatpush1.bf16.msra.mxu0 0
    %154 = vmatprep.subr.bf16.mxu0 0
    %155 = vmatpush1.bf16.msra.mxu0 0
    %156 = vmatprep.subr.bf16.mxu0 0
    %157 = vmatpush1.bf16.msra.mxu0 0
    %158 = vmatprep.subr.bf16.mxu0 0
    %159 = vmatpush1.bf16.msra.mxu0 0
    %160 = vmatprep.subr.bf16.mxu0 0
    %161 = vmatpush1.bf16.msra.mxu0 0
    %162 = vmatprep.subr.bf16.mxu0 0
    %163 = vmatpush1.bf16.msra.mxu0 0
    %164 = vmatprep.subr.bf16.mxu0 0
    %165 = vmatpush1.bf16.msra.mxu0 0
    %166 = vmatprep.subr.bf16.mxu0 0
    %167 = vmatpush1.bf16.msra.mxu0 0
    %168 = vmatprep.subr.bf16.mxu0 0
    %169 = vmatpush1.bf16.msra.mxu0 0
    %170 = vmatprep.subr.bf16.mxu0 0
    %171 = vmatpush1.bf16.msra.mxu0 0
    %172 = vmatprep.subr.bf16.mxu0 0
    %173 = vmatpush1.bf16.msra.mxu0 0
    %174 = vmatprep.subr.bf16.mxu0 0
    %175 = vmatpush1.bf16.msra.mxu0 0
    %176 = vmatprep.subr.bf16.mxu0 0
    %177 = vmatpush1.bf16.msra.mxu0 0
    %178 = vmatprep.subr.bf16.mxu0 0
    %179 = vmatpush1.bf16.msra.mxu0 0
    %180 = vmatprep.subr.bf16.mxu0 0
    %181 = vmatpush1.bf16.msra.mxu0 0
    %182 = vmatprep.mubr.bf16.mxu0 0
    %183 = vmatmul.mubr.bf16.gmra.mrb[0].mxu0 %v148
    %v184 = vpop.f32.mrb[0].mxu0
    %v185 = vadd.f32 0.0, %v184
    %v186 = vpop.f32.mrb[0].mxu0
    %v187 = vpop.f32.mrb[0].mxu0
    %v188 = vadd.f32 0.0, %v187
    %v189 = vpop.f32.mrb[0].mxu0
    %190 = vdwg.mxu0
    %v192 = vsel %vm83, 0, 0
    %194 = vmatprep.subr.bf16.mxu0 0
    %195 = vmatpush1.bf16.msra.mxu0 %v67
    %196 = vmatprep.subr.bf16.mxu0 0
    %197 = vmatpush1.bf16.msra.mxu0 %v68
    %198 = vmatprep.subr.bf16.mxu0 0
    %199 = vmatpush1.bf16.msra.mxu0 0
    %200 = vmatprep.subr.bf16.mxu0 0
    %201 = vmatpush1.bf16.msra.mxu0 0
    %202 = vmatprep.subr.bf16.mxu0 0
    %203 = vmatpush1.bf16.msra.mxu0 0
    %204 = vmatprep.subr.bf16.mxu0 0
    %205 = vmatpush1.bf16.msra.mxu0 0
    %206 = vmatprep.subr.bf16.mxu0 0
    %207 = vmatpush1.bf16.msra.mxu0 0
    %208 = vmatprep.subr.bf16.mxu0 0
    %209 = vmatpush1.bf16.msra.mxu0 0
    %210 = vmatprep.subr.bf16.mxu0 0
    %211 = vmatpush1.bf16.msra.mxu0 0
    %212 = vmatprep.subr.bf16.mxu0 0
    %213 = vmatpush1.bf16.msra.mxu0 0
    %214 = vmatprep.subr.bf16.mxu0 0
    %215 = vmatpush1.bf16.msra.mxu0 0
    %216 = vmatprep.subr.bf16.mxu0 0
    %217 = vmatpush1.bf16.msra.mxu0 0
    %218 = vmatprep.subr.bf16.mxu0 0
    %219 = vmatpush1.bf16.msra.mxu0 0
    %220 = vmatprep.subr.bf16.mxu0 0
    %221 = vmatpush1.bf16.msra.mxu0 0
    %222 = vmatprep.subr.bf16.mxu0 0
    %223 = vmatpush1.bf16.msra.mxu0 0
    %224 = vmatprep.subr.bf16.mxu0 0
    %225 = vmatpush1.bf16.msra.mxu0 0
    %226 = vmatprep.mubr.bf16.mxu0 0
    %227 = vmatmul.mubr.bf16.gmra.mrb[0].mxu0 %v192
    %v228 = vpop.f32.mrb[0].mxu0
    %v229 = vadd.f32 0.0, %v228
    %v230 = vpop.f32.mrb[0].mxu0
    %v231 = vpop.f32.mrb[0].mxu0
    %v232 = vpop.f32.mrb[0].mxu0
    %233 = vdwg.mxu0
    %v234 = vadd.f32 %v185, %v229
    %v235 = vxor.u32 %v234, 2147483648
    %v236 = vmul.f32 %v235, 1.442695
    %v237 = vpow.pop %v236
    %v238 = vadd.f32 %v237, 1.0
    %v239 = vrcp.pop %v238
    %v240 = vmul.f32 1.0, %v239
    %v241 = vtanh.pop %v234
    %v242 = vmul.f32 %v240, 0.0
    %244 = vrot.lane.b32.xlu0 %v241, 64
    %v245 = vpop.permute.xlu0 %244
    %v247 = vmul.f32 %v240, %v245
    %249 = vrot.lane.b32.xlu0 %v247, 32
    %v250 = vpop.permute.xlu0 %249
    %v252 = vadd.f32 %v242, %v250
    %v253 = vtanh.pop %v252
    %255 = vrot.lane.b32.xlu0 %v253, 64
    %v256 = vpop.permute.xlu0 %255
    %v258 = vmul.f32 %v240, %v256
    %v259 = vpack.c.bf16 %v258, %v258
    %261 = vrot.lane.b32.xlu0 %v259, 32
    %v262 = vpop.permute.xlu0 %261
    %v264 = vsel %vm83, %v262, 0
    %266 = vmatprep.subr.bf16.mxu0 0
    %267 = vmatpush1.bf16.msra.mxu0 %v67
    %268 = vmatprep.subr.bf16.mxu0 0
    %269 = vmatpush1.bf16.msra.mxu0 %v68
    %270 = vmatprep.subr.bf16.mxu0 0
    %271 = vmatpush1.bf16.msra.mxu0 0
    %272 = vmatprep.subr.bf16.mxu0 0
    %273 = vmatpush1.bf16.msra.mxu0 0
    %274 = vmatprep.subr.bf16.mxu0 0
    %275 = vmatpush1.bf16.msra.mxu0 0
    %276 = vmatprep.subr.bf16.mxu0 0
    %277 = vmatpush1.bf16.msra.mxu0 0
    %278 = vmatprep.subr.bf16.mxu0 0
    %279 = vmatpush1.bf16.msra.mxu0 0
    %280 = vmatprep.subr.bf16.mxu0 0
    %281 = vmatpush1.bf16.msra.mxu0 0
    %282 = vmatprep.subr.bf16.mxu0 0
    %283 = vmatpush1.bf16.msra.mxu0 0
    %284 = vmatprep.subr.bf16.mxu0 0
    %285 = vmatpush1.bf16.msra.mxu0 0
    %286 = vmatprep.subr.bf16.mxu0 0
    %287 = vmatpush1.bf16.msra.mxu0 0
    %288 = vmatprep.subr.bf16.mxu0 0
    %289 = vmatpush1.bf16.msra.mxu0 0
    %290 = vmatprep.subr.bf16.mxu0 0
    %291 = vmatpush1.bf16.msra.mxu0 0
    %292 = vmatprep.subr.bf16.mxu0 0
    %293 = vmatpush1.bf16.msra.mxu0 0
    %294 = vmatprep.subr.bf16.mxu0 0
    %295 = vmatpush1.bf16.msra.mxu0 0
    %296 = vmatprep.subr.bf16.mxu0 0
    %297 = vmatpush1.bf16.msra.mxu0 0
    %298 = vmatprep.mubr.bf16.mxu0 0
    %299 = vmatmul.mubr.bf16.gmra.mrb[0].mxu0 %v264
    %v300 = vpop.f32.mrb[0].mxu0
    %v301 = vadd.f32 0.0, %v300
    %v302 = vpop.f32.mrb[0].mxu0
    %v303 = vpop.f32.mrb[0].mxu0
    %v304 = vpop.f32.mrb[0].mxu0
    %305 = vdwg.mxu0
    %v307 = vrot.slane %v301, 6
    %v309 = vadd.f32 %v185, %v307
    %v310 = vxor.u32 %v309, 2147483648
    %v311 = vmul.f32 %v310, 1.442695
    %v312 = vpow.pop %v311
    %v313 = vadd.f32 %v312, 1.0
    %v314 = vrcp.pop %v313
    %v315 = vmul.f32 1.0, %v314
    %v316 = vtanh.pop %v309
    %v318 = vrot.slane %v252, 6
    %v320 = vmul.f32 %v315, %v318
    %322 = vrot.lane.b32.xlu0 %v316, 64
    %v323 = vpop.permute.xlu0 %322
    %v325 = vmul.f32 %v315, %v323
    %327 = vrot.lane.b32.xlu0 %v325, 32
    %v328 = vpop.permute.xlu0 %327
    %v330 = vadd.f32 %v320, %v328
    %v331 = vtanh.pop %v330
    %333 = vrot.lane.b32.xlu0 %v331, 64
    %v334 = vpop.permute.xlu0 %333
    %v336 = vmul.f32 %v315, %v334
    %v337 = vpack.c.bf16 %v336, %v336
    %v339 = vrot.slane %v337, 1
    %340 = vrot.lane.b32.xlu0 %v339, 32
    %v341 = vpop.permute.xlu0 %340
    %v343 = vsel %vm83, %v341, 0
    %345 = vmatprep.subr.bf16.mxu0 0
    %346 = vmatpush1.bf16.msra.mxu0 %v67
    %347 = vmatprep.subr.bf16.mxu0 0
    %348 = vmatpush1.bf16.msra.mxu0 %v68
    %349 = vmatprep.subr.bf16.mxu0 0
    %350 = vmatpush1.bf16.msra.mxu0 0
    %351 = vmatprep.subr.bf16.mxu0 0
    %352 = vmatpush1.bf16.msra.mxu0 0
    %353 = vmatprep.subr.bf16.mxu0 0
    %354 = vmatpush1.bf16.msra.mxu0 0
    %355 = vmatprep.subr.bf16.mxu0 0
    %356 = vmatpush1.bf16.msra.mxu0 0
    %357 = vmatprep.subr.bf16.mxu0 0
    %358 = vmatpush1.bf16.msra.mxu0 0
    %359 = vmatprep.subr.bf16.mxu0 0
    %360 = vmatpush1.bf16.msra.mxu0 0
    %361 = vmatprep.subr.bf16.mxu0 0
    %362 = vmatpush1.bf16.msra.mxu0 0
    %363 = vmatprep.subr.bf16.mxu0 0
    %364 = vmatpush1.bf16.msra.mxu0 0
    %365 = vmatprep.subr.bf16.mxu0 0
    %366 = vmatpush1.bf16.msra.mxu0 0
    %367 = vmatprep.subr.bf16.mxu0 0
    %368 = vmatpush1.bf16.msra.mxu0 0
    %369 = vmatprep.subr.bf16.mxu0 0
    %370 = vmatpush1.bf16.msra.mxu0 0
    %371 = vmatprep.subr.bf16.mxu0 0
    %372 = vmatpush1.bf16.msra.mxu0 0
    %373 = vmatprep.subr.bf16.mxu0 0
    %374 = vmatpush1.bf16.msra.mxu0 0
    %375 = vmatprep.subr.bf16.mxu0 0
    %376 = vmatpush1.bf16.msra.mxu0 0
    %377 = vmatprep.mubr.bf16.mxu0 0
    %378 = vmatmul.mubr.bf16.gmra.mrb[0].mxu0 %v343
    %v379 = vpop.f32.mrb[0].mxu0
    %v380 = vadd.f32 0.0, %v379
    %v381 = vpop.f32.mrb[0].mxu0
    %v382 = vpop.f32.mrb[0].mxu0
    %v383 = vpop.f32.mrb[0].mxu0
    %384 = vdwg.mxu0
    %v386 = vrot.slane %v380, 4
    %v388 = vadd.f32 %v185, %v386
    %v389 = vxor.u32 %v388, 2147483648
    %v390 = vmul.f32 %v389, 1.442695
    %v391 = vpow.pop %v390
    %v392 = vadd.f32 %v391, 1.0
    %v393 = vrcp.pop %v392
    %v394 = vmul.f32 1.0, %v393
    %v395 = vtanh.pop %v388
    %v397 = vrot.slane %v330, 6
    %v399 = vmul.f32 %v394, %v397
    %401 = vrot.lane.b32.xlu0 %v395, 64
    %v402 = vpop.permute.xlu0 %401
    %v404 = vmul.f32 %v394, %v402
    %406 = vrot.lane.b32.xlu0 %v404, 32
    %v407 = vpop.permute.xlu0 %406
    %v409 = vadd.f32 %v399, %v407
    %v410 = vtanh.pop %v409
    %412 = vrot.lane.b32.xlu0 %v410, 64
    %v413 = vpop.permute.xlu0 %412
    %v415 = vmul.f32 %v394, %v413
    %v416 = vpack.c.bf16 %v415, %v415
    %v418 = vrot.slane %v416, 2
    %419 = vrot.lane.b32.xlu0 %v418, 32
    %v420 = vpop.permute.xlu0 %419
    %v422 = vsel %vm83, %v420, 0
    %424 = vmatprep.subr.bf16.mxu0 0
    %425 = vmatpush1.bf16.msra.mxu0 %v67
    %426 = vmatprep.subr.bf16.mxu0 0
    %427 = vmatpush1.bf16.msra.mxu0 %v68
    %428 = vmatprep.subr.bf16.mxu0 0
    %429 = vmatpush1.bf16.msra.mxu0 0
    %430 = vmatprep.subr.bf16.mxu0 0
    %431 = vmatpush1.bf16.msra.mxu0 0
    %432 = vmatprep.subr.bf16.mxu0 0
    %433 = vmatpush1.bf16.msra.mxu0 0
    %434 = vmatprep.subr.bf16.mxu0 0
    %435 = vmatpush1.bf16.msra.mxu0 0
    %436 = vmatprep.subr.bf16.mxu0 0
    %437 = vmatpush1.bf16.msra.mxu0 0
    %438 = vmatprep.subr.bf16.mxu0 0
    %439 = vmatpush1.bf16.msra.mxu0 0
    %440 = vmatprep.subr.bf16.mxu0 0
    %441 = vmatpush1.bf16.msra.mxu0 0
    %442 = vmatprep.subr.bf16.mxu0 0
    %443 = vmatpush1.bf16.msra.mxu0 0
    %444 = vmatprep.subr.bf16.mxu0 0
    %445 = vmatpush1.bf16.msra.mxu0 0
    %446 = vmatprep.subr.bf16.mxu0 0
    %447 = vmatpush1.bf16.msra.mxu0 0
    %448 = vmatprep.subr.bf16.mxu0 0
    %449 = vmatpush1.bf16.msra.mxu0 0
    %450 = vmatprep.subr.bf16.mxu0 0
    %451 = vmatpush1.bf16.msra.mxu0 0
    %452 = vmatprep.subr.bf16.mxu0 0
    %453 = vmatpush1.bf16.msra.mxu0 0
    %454 = vmatprep.subr.bf16.mxu0 0
    %455 = vmatpush1.bf16.msra.mxu0 0
    %456 = vmatprep.mubr.bf16.mxu0 0
    %457 = vmatmul.mubr.bf16.gmra.mrb[0].mxu0 %v422
    %v458 = vpop.f32.mrb[0].mxu0
    %v459 = vadd.f32 0.0, %v458
    %v460 = vpop.f32.mrb[0].mxu0
    %v461 = vpop.f32.mrb[0].mxu0
    %v462 = vpop.f32.mrb[0].mxu0
    %463 = vdwg.mxu0
    %v465 = vrot.slane %v459, 2
    %v467 = vadd.f32 %v185, %v465
    %v468 = vxor.u32 %v467, 2147483648
    %v469 = vmul.f32 %v468, 1.442695
    %v470 = vpow.pop %v469
    %v471 = vadd.f32 %v470, 1.0
    %v472 = vrcp.pop %v471
    %v473 = vmul.f32 1.0, %v472
    %v474 = vtanh.pop %v467
    %v476 = vrot.slane %v409, 6
    %v478 = vmul.f32 %v473, %v476
    %480 = vrot.lane.b32.xlu0 %v474, 64
    %v481 = vpop.permute.xlu0 %480
    %v483 = vmul.f32 %v473, %v481
    %485 = vrot.lane.b32.xlu0 %v483, 32
    %v486 = vpop.permute.xlu0 %485
    %v488 = vadd.f32 %v478, %v486
    %v489 = vtanh.pop %v488
    %491 = vrot.lane.b32.xlu0 %v489, 64
    %v492 = vpop.permute.xlu0 %491
    %v494 = vmul.f32 %v473, %v492
    %v495 = vpack.c.bf16 %v494, %v494
    %v497 = vrot.slane %v495, 3
    %498 = vrot.lane.b32.xlu0 %v497, 32
    %v499 = vpop.permute.xlu0 %498
    %v501 = vsel %vm83, %v499, 0
    %503 = vmatprep.subr.bf16.mxu0 0
    %504 = vmatpush1.bf16.msra.mxu0 %v67
    %505 = vmatprep.subr.bf16.mxu0 0
    %506 = vmatpush1.bf16.msra.mxu0 %v68
    %507 = vmatprep.subr.bf16.mxu0 0
    %508 = vmatpush1.bf16.msra.mxu0 0
    %509 = vmatprep.subr.bf16.mxu0 0
    %510 = vmatpush1.bf16.msra.mxu0 0
    %511 = vmatprep.subr.bf16.mxu0 0
    %512 = vmatpush1.bf16.msra.mxu0 0
    %513 = vmatprep.subr.bf16.mxu0 0
    %514 = vmatpush1.bf16.msra.mxu0 0
    %515 = vmatprep.subr.bf16.mxu0 0
    %516 = vmatpush1.bf16.msra.mxu0 0
    %517 = vmatprep.subr.bf16.mxu0 0
    %518 = vmatpush1.bf16.msra.mxu0 0
    %519 = vmatprep.subr.bf16.mxu0 0
    %520 = vmatpush1.bf16.msra.mxu0 0
    %521 = vmatprep.subr.bf16.mxu0 0
    %522 = vmatpush1.bf16.msra.mxu0 0
    %523 = vmatprep.subr.bf16.mxu0 0
    %524 = vmatpush1.bf16.msra.mxu0 0
    %525 = vmatprep.subr.bf16.mxu0 0
    %526 = vmatpush1.bf16.msra.mxu0 0
    %527 = vmatprep.subr.bf16.mxu0 0
    %528 = vmatpush1.bf16.msra.mxu0 0
    %529 = vmatprep.subr.bf16.mxu0 0
    %530 = vmatpush1.bf16.msra.mxu0 0
    %531 = vmatprep.subr.bf16.mxu0 0
    %532 = vmatpush1.bf16.msra.mxu0 0
    %533 = vmatprep.subr.bf16.mxu0 0
    %534 = vmatpush1.bf16.msra.mxu0 0
    %535 = vmatprep.mubr.bf16.mxu0 0
    %536 = vmatmul.mubr.bf16.gmra.mrb[0].mxu0 %v501
    %v537 = vpop.f32.mrb[0].mxu0
    %v538 = vadd.f32 0.0, %v537
    %v539 = vpop.f32.mrb[0].mxu0
    %v540 = vpop.f32.mrb[0].mxu0
    %v541 = vpop.f32.mrb[0].mxu0
    %542 = vdwg.mxu0
    %v543 = vadd.f32 %v188, %v538
    %v544 = vxor.u32 %v543, 2147483648
    %v545 = vmul.f32 %v544, 1.442695
    %v546 = vpow.pop %v545
    %v547 = vadd.f32 %v546, 1.0
    %v548 = vrcp.pop %v547
    %v549 = vmul.f32 1.0, %v548
    %v550 = vtanh.pop %v543
    %v552 = vrot.slane %v488, 6
    %v554 = vmul.f32 %v549, %v552
    %556 = vrot.lane.b32.xlu0 %v550, 64
    %v557 = vpop.permute.xlu0 %556
    %v559 = vmul.f32 %v549, %v557
    %561 = vrot.lane.b32.xlu0 %v559, 32
    %v562 = vpop.permute.xlu0 %561
    %v564 = vadd.f32 %v554, %v562
    %v565 = vtanh.pop %v564
    %567 = vrot.lane.b32.xlu0 %v565, 64
    %v568 = vpop.permute.xlu0 %567
    %v570 = vmul.f32 %v549, %v568
    %v571 = vpack.c.bf16 %v570, %v570
    %573 = vrot.lane.b32.xlu0 %v571, 32
    %v574 = vpop.permute.xlu0 %573
    %v576 = vsel %vm83, %v574, 0
    %578 = vmatprep.subr.bf16.mxu0 0
    %579 = vmatpush1.bf16.msra.mxu0 %v67
    %580 = vmatprep.subr.bf16.mxu0 0
    %581 = vmatpush1.bf16.msra.mxu0 %v68
    %582 = vmatprep.subr.bf16.mxu0 0
    %583 = vmatpush1.bf16.msra.mxu0 0
    %584 = vmatprep.subr.bf16.mxu0 0
    %585 = vmatpush1.bf16.msra.mxu0 0
    %586 = vmatprep.subr.bf16.mxu0 0
    %587 = vmatpush1.bf16.msra.mxu0 0
    %588 = vmatprep.subr.bf16.mxu0 0
    %589 = vmatpush1.bf16.msra.mxu0 0
    %590 = vmatprep.subr.bf16.mxu0 0
    %591 = vmatpush1.bf16.msra.mxu0 0
    %592 = vmatprep.subr.bf16.mxu0 0
    %593 = vmatpush1.bf16.msra.mxu0 0
    %594 = vmatprep.subr.bf16.mxu0 0
    %595 = vmatpush1.bf16.msra.mxu0 0
    %596 = vmatprep.subr.bf16.mxu0 0
    %597 = vmatpush1.bf16.msra.mxu0 0
    %598 = vmatprep.subr.bf16.mxu0 0
    %599 = vmatpush1.bf16.msra.mxu0 0
    %600 = vmatprep.subr.bf16.mxu0 0
    %601 = vmatpush1.bf16.msra.mxu0 0
    %602 = vmatprep.subr.bf16.mxu0 0
    %603 = vmatpush1.bf16.msra.mxu0 0
    %604 = vmatprep.subr.bf16.mxu0 0
    %605 = vmatpush1.bf16.msra.mxu0 0
    %606 = vmatprep.subr.bf16.mxu0 0
    %607 = vmatpush1.bf16.msra.mxu0 0
    %608 = vmatprep.subr.bf16.mxu0 0
    %609 = vmatpush1.bf16.msra.mxu0 0
    %610 = vmatprep.mubr.bf16.mxu0 0
    %611 = vmatmul.mubr.bf16.gmra.mrb[0].mxu0 %v576
    %v612 = vpop.f32.mrb[0].mxu0
    %v613 = vadd.f32 0.0, %v612
    %v614 = vpop.f32.mrb[0].mxu0
    %v615 = vpop.f32.mrb[0].mxu0
    %v616 = vpop.f32.mrb[0].mxu0
    %617 = vdwg.mxu0
    %v619 = vrot.slane %v613, 6
    %v621 = vadd.f32 %v188, %v619
    %v622 = vxor.u32 %v621, 2147483648
    %v623 = vmul.f32 %v622, 1.442695
    %v624 = vpow.pop %v623
    %v625 = vadd.f32 %v624, 1.0
    %v626 = vrcp.pop %v625
    %v627 = vmul.f32 1.0, %v626
    %v628 = vtanh.pop %v621
    %v630 = vrot.slane %v564, 6
    %v632 = vmul.f32 %v627, %v630
    %634 = vrot.lane.b32.xlu0 %v628, 64
    %v635 = vpop.permute.xlu0 %634
    %v637 = vmul.f32 %v627, %v635
    %639 = vrot.lane.b32.xlu0 %v637, 32
    %v640 = vpop.permute.xlu0 %639
    %v642 = vadd.f32 %v632, %v640
    %v643 = vtanh.pop %v642
    %645 = vrot.lane.b32.xlu0 %v643, 64
    %v646 = vpop.permute.xlu0 %645
    %v648 = vmul.f32 %v627, %v646
    %v649 = vpack.c.bf16 %v648, %v648
    %v651 = vrot.slane %v649, 1
    %652 = vrot.lane.b32.xlu0 %v651, 32
    %v653 = vpop.permute.xlu0 %652
    %v655 = vsel %vm83, %v653, 0
    %657 = vmatprep.subr.bf16.mxu0 0
    %658 = vmatpush1.bf16.msra.mxu0 %v67
    %659 = vmatprep.subr.bf16.mxu0 0
    %660 = vmatpush1.bf16.msra.mxu0 %v68
    %661 = vmatprep.subr.bf16.mxu0 0
    %662 = vmatpush1.bf16.msra.mxu0 0
    %663 = vmatprep.subr.bf16.mxu0 0
    %664 = vmatpush1.bf16.msra.mxu0 0
    %665 = vmatprep.subr.bf16.mxu0 0
    %666 = vmatpush1.bf16.msra.mxu0 0
    %667 = vmatprep.subr.bf16.mxu0 0
    %668 = vmatpush1.bf16.msra.mxu0 0
    %669 = vmatprep.subr.bf16.mxu0 0
    %670 = vmatpush1.bf16.msra.mxu0 0
    %671 = vmatprep.subr.bf16.mxu0 0
    %672 = vmatpush1.bf16.msra.mxu0 0
    %673 = vmatprep.subr.bf16.mxu0 0
    %674 = vmatpush1.bf16.msra.mxu0 0
    %675 = vmatprep.subr.bf16.mxu0 0
    %676 = vmatpush1.bf16.msra.mxu0 0
    %677 = vmatprep.subr.bf16.mxu0 0
    %678 = vmatpush1.bf16.msra.mxu0 0
    %679 = vmatprep.subr.bf16.mxu0 0
    %680 = vmatpush1.bf16.msra.mxu0 0
    %681 = vmatprep.subr.bf16.mxu0 0
    %682 = vmatpush1.bf16.msra.mxu0 0
    %683 = vmatprep.subr.bf16.mxu0 0
    %684 = vmatpush1.bf16.msra.mxu0 0
    %685 = vmatprep.subr.bf16.mxu0 0
    %686 = vmatpush1.bf16.msra.mxu0 0
    %687 = vmatprep.subr.bf16.mxu0 0
    %688 = vmatpush1.bf16.msra.mxu0 0
    %689 = vmatprep.mubr.bf16.mxu0 0
    %690 = vmatmul.mubr.bf16.gmra.mrb[0].mxu0 %v655
    %v691 = vpop.f32.mrb[0].mxu0
    %v692 = vadd.f32 0.0, %v691
    %v693 = vpop.f32.mrb[0].mxu0
    %v694 = vpop.f32.mrb[0].mxu0
    %v695 = vpop.f32.mrb[0].mxu0
    %696 = vdwg.mxu0
    %v698 = vrot.slane %v692, 4
    %v700 = vadd.f32 %v188, %v698
    %v701 = vxor.u32 %v700, 2147483648
    %v702 = vmul.f32 %v701, 1.442695
    %v703 = vpow.pop %v702
    %v704 = vadd.f32 %v703, 1.0
    %v705 = vrcp.pop %v704
    %v706 = vmul.f32 1.0, %v705
    %v707 = vtanh.pop %v700
    %v709 = vrot.slane %v642, 6
    %v711 = vmul.f32 %v706, %v709
    %713 = vrot.lane.b32.xlu0 %v707, 64
    %v714 = vpop.permute.xlu0 %713
    %v716 = vmul.f32 %v706, %v714
    %718 = vrot.lane.b32.xlu0 %v716, 32
    %v719 = vpop.permute.xlu0 %718
    %v721 = vadd.f32 %v711, %v719
    %v722 = vtanh.pop %v721
    %724 = vrot.lane.b32.xlu0 %v722, 64
    %v725 = vpop.permute.xlu0 %724
    %v727 = vmul.f32 %v706, %v725
    %v728 = vpack.c.bf16 %v727, %v727
    %v730 = vrot.slane %v728, 2
    %731 = vrot.lane.b32.xlu0 %v730, 32
    %v732 = vpop.permute.xlu0 %731
    %v734 = vsel %vm83, %v732, 0
    %736 = vmatprep.subr.bf16.mxu0 0
    %737 = vmatpush1.bf16.msra.mxu0 %v67
    %738 = vmatprep.subr.bf16.mxu0 0
    %739 = vmatpush1.bf16.msra.mxu0 %v68
    %740 = vmatprep.subr.bf16.mxu0 0
    %741 = vmatpush1.bf16.msra.mxu0 0
    %742 = vmatprep.subr.bf16.mxu0 0
    %743 = vmatpush1.bf16.msra.mxu0 0
    %744 = vmatprep.subr.bf16.mxu0 0
    %745 = vmatpush1.bf16.msra.mxu0 0
    %746 = vmatprep.subr.bf16.mxu0 0
    %747 = vmatpush1.bf16.msra.mxu0 0
    %748 = vmatprep.subr.bf16.mxu0 0
    %749 = vmatpush1.bf16.msra.mxu0 0
    %750 = vmatprep.subr.bf16.mxu0 0
    %751 = vmatpush1.bf16.msra.mxu0 0
    %752 = vmatprep.subr.bf16.mxu0 0
    %753 = vmatpush1.bf16.msra.mxu0 0
    %754 = vmatprep.subr.bf16.mxu0 0
    %755 = vmatpush1.bf16.msra.mxu0 0
    %756 = vmatprep.subr.bf16.mxu0 0
    %757 = vmatpush1.bf16.msra.mxu0 0
    %758 = vmatprep.subr.bf16.mxu0 0
    %759 = vmatpush1.bf16.msra.mxu0 0
    %760 = vmatprep.subr.bf16.mxu0 0
    %761 = vmatpush1.bf16.msra.mxu0 0
    %762 = vmatprep.subr.bf16.mxu0 0
    %763 = vmatpush1.bf16.msra.mxu0 0
    %764 = vmatprep.subr.bf16.mxu0 0
    %765 = vmatpush1.bf16.msra.mxu0 0
    %766 = vmatprep.subr.bf16.mxu0 0
    %767 = vmatpush1.bf16.msra.mxu0 0
    %768 = vmatprep.mubr.bf16.mxu0 0
    %769 = vmatmul.mubr.bf16.gmra.mrb[0].mxu0 %v734
    %v770 = vpop.f32.mrb[0].mxu0
    %v771 = vadd.f32 0.0, %v770
    %v772 = vpop.f32.mrb[0].mxu0
    %v773 = vpop.f32.mrb[0].mxu0
    %v774 = vpop.f32.mrb[0].mxu0
    %775 = vdwg.mxu0
    %v777 = vrot.slane %v771, 2
    %v779 = vadd.f32 %v188, %v777
    %v780 = vxor.u32 %v779, 2147483648
    %v781 = vmul.f32 %v780, 1.442695
    %v782 = vpow.pop %v781
    %v783 = vadd.f32 %v782, 1.0
    %v784 = vrcp.pop %v783
    %v785 = vmul.f32 1.0, %v784
    %v786 = vtanh.pop %v779
    %v788 = vrot.slane %v721, 6
    %v790 = vmul.f32 %v785, %v788
    %792 = vrot.lane.b32.xlu0 %v786, 64
    %v793 = vpop.permute.xlu0 %792
    %v795 = vmul.f32 %v785, %v793
    %797 = vrot.lane.b32.xlu0 %v795, 32
    %v798 = vpop.permute.xlu0 %797
    %v800 = vadd.f32 %v790, %v798
    %v801 = vtanh.pop %v800
    %803 = vrot.lane.b32.xlu0 %v801, 64
    %v804 = vpop.permute.xlu0 %803
    %v806 = vmul.f32 %v785, %v804
    %v807 = vpack.c.bf16 %v806, %v806
    %v809 = vlaneseq
    %v810 = vshrl.u32 %v809, 7
    %v811 = vsub.s32 0, %v810
    %v812 = vrot.slane %v76, %v811
    %v815 = vrot.slane %v807, 3
    %816 = vrot.lane.b32.xlu0 %v815, 32
    %v817 = vpop.permute.xlu0 %816
    %v819 = vsel %vm83, %v817, 0
    %821 = vmatprep.subr.bf16.mxu0 0
    %822 = vmatpush1.bf16.msra.mxu0 %v73
    %823 = vmatprep.subr.bf16.mxu0 0
    %824 = vmatpush1.bf16.msra.mxu0 %v74
    %825 = vmatprep.subr.bf16.mxu0 0
    %826 = vmatpush1.bf16.msra.mxu0 0
    %827 = vmatprep.subr.bf16.mxu0 0
    %828 = vmatpush1.bf16.msra.mxu0 0
    %829 = vmatprep.subr.bf16.mxu0 0
    %830 = vmatpush1.bf16.msra.mxu0 0
    %831 = vmatprep.subr.bf16.mxu0 0
    %832 = vmatpush1.bf16.msra.mxu0 0
    %833 = vmatprep.subr.bf16.mxu0 0
    %834 = vmatpush1.bf16.msra.mxu0 0
    %835 = vmatprep.subr.bf16.mxu0 0
    %836 = vmatpush1.bf16.msra.mxu0 0
    %837 = vmatprep.subr.bf16.mxu0 0
    %838 = vmatpush1.bf16.msra.mxu0 0
    %839 = vmatprep.subr.bf16.mxu0 0
    %840 = vmatpush1.bf16.msra.mxu0 0
    %841 = vmatprep.subr.bf16.mxu0 0
    %842 = vmatpush1.bf16.msra.mxu0 0
    %843 = vmatprep.subr.bf16.mxu0 0
    %844 = vmatpush1.bf16.msra.mxu0 0
    %845 = vmatprep.subr.bf16.mxu0 0
    %846 = vmatpush1.bf16.msra.mxu0 0
    %847 = vmatprep.subr.bf16.mxu0 0
    %848 = vmatpush1.bf16.msra.mxu0 0
    %849 = vmatprep.subr.bf16.mxu0 0
    %850 = vmatpush1.bf16.msra.mxu0 0
    %851 = vmatprep.subr.bf16.mxu0 0
    %852 = vmatpush1.bf16.msra.mxu0 0
    %853 = vmatprep.mubr.bf16.mxu0 0
    %854 = vmatmul.mubr.bf16.gmra.mrb[0].mxu0 %v819
    %v855 = vpop.f32.mrb[0].mxu0
    %v856 = vadd.f32 %v812, %v855
    %v857 = vpop.f32.mrb[0].mxu0
    %v858 = vpop.f32.mrb[0].mxu0
    %v859 = vpop.f32.mrb[0].mxu0
    %860 = vdwg.mxu0
    %vm861 = vcmask 123904
    %862 = vst.msk [vmem:[#allocation7] sm:$0x3] %vm861, %v856
    // Predicated region
    $region38: #{tpu_custom_call.1} parent=1 // pred_check
      _
    $region39: #{tpu_custom_call.1} parent=1 // pred_check_branch
      %864 = sbr.rel (0) target = $region41
    $region40: #{tpu_custom_call.1} parent=1 // pred_region
      %s866 = ssub.s32 32, 32
      %867 = vsyncadd [#allocation4], %s866
      %s869 = sshll.u32 [#allocation7], 4
      %s870 = int_to_ptr.vmem [resolvable:$true] %s869
      %872 = dma.vmem_to_hbm [thread:$0]  %s870, 32, %s7, [#allocation4]
    $region41: #{tpu_custom_call.1} parent=1 // pred_fallthru
      _
    // Predicated region
    $region42: #{tpu_custom_call.1} parent=1 // pred_check
      _
    $region43: #{tpu_custom_call.1} parent=1 // pred_check_branch
      %874 = sbr.rel (0) target = $region45
    $region44: #{tpu_custom_call.1} parent=1 // pred_region
      %875 = dma.done [#allocation4], 32
    $region45: #{tpu_custom_call.1} parent=1 // pred_fallthru
      _
    %876 = vsyncpa [#allocation3], 1
    %877 = vsyncpa [#allocation6], 1
    %878 = vsyncpa [#allocation4], 1

</llo_original>
